<compile_context>
chip_gen: v5e
topology: v5e:2x2
jax: 0.10.0
libtpu: 0.0.40
codegen_flags: <defaults>
</compile_context>

<pallas_src>
import functools

import jax
import jax.numpy as jnp
from jax.experimental import pallas as pl
from jax.experimental.pallas import tpu as pltpu


def _round_up(x, m):
    return -(-x // m) * m


def _pad2(x, rows, cols):
    r, c = x.shape
    if r == rows and c == cols:
        return x
    return jnp.pad(x, ((0, rows - r), (0, cols - c)))


# ---------------------------------------------------------------------------
# Stage 1: p = srcfeat @ W_src   (single-K matmul, tiled over rows / out cols)
# ---------------------------------------------------------------------------
def _matmul_kernel(a_ref, b_ref, o_ref):
    o_ref[...] = jnp.dot(
        a_ref[...], b_ref[...], preferred_element_type=jnp.float32
    ).astype(o_ref.dtype)


# ---------------------------------------------------------------------------
# Stage 2: out = dstfeat @ W_dst + Adj @ p + b
#   grid = (dst tiles, out tiles, src-reduction tiles), f32 accumulator.
# ---------------------------------------------------------------------------
def _gcn_agg_kernel(adj_ref, p_ref, dst_ref, w_dst_ref, b_ref, out_ref, acc_ref):
    k = pl.program_id(2)

    @pl.when(k == 0)
    def _init():
        # dstfeat @ W_dst contribution (independent of the src reduction axis)
        # doubles as the accumulator initialization.
        acc_ref[...] = jnp.dot(
            dst_ref[...], w_dst_ref[...], preferred_element_type=jnp.float32)

    # Neighbor-aggregation contribution of this src tile: Adj @ (srcfeat@W_src).
    acc_ref[...] += jnp.dot(
        adj_ref[...], p_ref[...], preferred_element_type=jnp.float32)

    @pl.when(k == pl.num_programs(2) - 1)
    def _finalize():
        # f32 epilogue; bias added exactly once; single cast on store.
        out_ref[...] = (acc_ref[...] + b_ref[...]).astype(out_ref.dtype)


def graph_conv_layer(adj, srcfeat, dstfeat, weight, bias,
                     compute_dtype=jnp.bfloat16):
    """
    adj:     [num_dst, num_src]   dense weighted adjacency ('affine' edges)
    srcfeat: [num_src, in_feats]
    dstfeat: [num_dst, in_feats]
    weight:  [out_feats, 2*in_feats]   (nn.Linear weight)
    bias:    [out_feats]
    returns: [num_dst, out_feats]
    """
    num_dst, num_src = adj.shape
    in_feats = srcfeat.shape[1]
    out_feats = weight.shape[0]
    out_dtype = dstfeat.dtype

    # ---- Tile sizes (lane dims padded to 128, sublane dims to 8) -----------
    TM = min(256, _round_up(num_dst, 8))        # dst-row tile
    TN = min(256, _round_up(out_feats, 128))    # out-col tile (lane dense)
    TK = min(512, _round_up(num_src, 128))      # src-reduction tile
    F_pad = _round_up(in_feats, 128)
    D_pad = _round_up(num_dst, TM)
    O_pad = _round_up(out_feats, TN)
    S_pad = _round_up(num_src, TK)

    # Split Linear weight: first half acts on dstfeat, second half on the
    # aggregated features. Transpose so kernels do plain A @ W. Zero padding
    # keeps the split-weight sum exactly equal to concat-then-Linear.
    w_dst = jnp.transpose(weight[:, :in_feats])   # [in_feats, out_feats]
    w_src = jnp.transpose(weight[:, in_feats:])   # [in_feats, out_feats]

    adj_p = _pad2(adj.astype(compute_dtype), D_pad, S_pad)
    src_p = _pad2(srcfeat.astype(compute_dtype), S_pad, F_pad)
    dst_p = _pad2(dstfeat.astype(compute_dtype), D_pad, F_pad)
    w_dst_p = _pad2(w_dst.astype(compute_dtype), F_pad, O_pad)
    w_src_p = _pad2(w_src.astype(compute_dtype), F_pad, O_pad)
    b_p = _pad2(bias.astype(jnp.float32).reshape(1, out_feats), 1, O_pad)

    # ---- Stage 1: p = srcfeat @ W_src --------------------------------------
    p = pl.pallas_call(
        _matmul_kernel,
        out_shape=jax.ShapeDtypeStruct((S_pad, O_pad), compute_dtype),
        grid_spec=pltpu.PrefetchScalarGridSpec(
            num_scalar_prefetch=0,
            grid=(S_pad // TK, O_pad // TN),
            in_specs=[
                pl.BlockSpec((TK, F_pad), lambda i, j: (i, 0)),
                pl.BlockSpec((F_pad, TN), lambda i, j: (0, j)),
            ],
            out_specs=pl.BlockSpec((TK, TN), lambda i, j: (i, j)),
        ),
        compiler_params=pltpu.CompilerParams(
            dimension_semantics=("parallel", "parallel")),
    )(src_p, w_src_p)

    # ---- Stage 2: out = dst @ W_dst + Adj @ p + b --------------------------
    itemsize = lambda a: jnp.dtype(a.dtype).itemsize
    flops = 2 * D_pad * S_pad * O_pad + 2 * D_pad * F_pad * O_pad
    bytes_accessed = (adj_p.size * itemsize(adj_p)
                      + p.size * itemsize(p)
                      + dst_p.size * itemsize(dst_p)
                      + w_dst_p.size * itemsize(w_dst_p)
                      + b_p.size * itemsize(b_p)
                      + D_pad * O_pad * jnp.dtype(out_dtype).itemsize)

    out_p = pl.pallas_call(
        _gcn_agg_kernel,
        out_shape=jax.ShapeDtypeStruct((D_pad, O_pad), out_dtype),
        grid_spec=pltpu.PrefetchScalarGridSpec(
            num_scalar_prefetch=0,
            grid=(D_pad // TM, O_pad // TN, S_pad // TK),
            in_specs=[
                pl.BlockSpec((TM, TK), lambda i, j, k: (i, k)),      # Adj
                pl.BlockSpec((TK, TN), lambda i, j, k: (k, j)),      # p
                pl.BlockSpec((TM, F_pad), lambda i, j, k: (i, 0)),   # dstfeat
                pl.BlockSpec((F_pad, TN), lambda i, j, k: (0, j)),   # W_dst
                pl.BlockSpec((1, TN), lambda i, j, k: (0, j)),       # bias
            ],
            out_specs=pl.BlockSpec((TM, TN), lambda i, j, k: (i, j)),
            scratch_shapes=[pltpu.VMEM((TM, TN), jnp.float32)],
        ),
        compiler_params=pltpu.CompilerParams(
            dimension_semantics=("parallel", "parallel", "arbitrary")),
        cost_estimate=pl.CostEstimate(
            flops=flops, transcendentals=0, bytes_accessed=bytes_accessed),
    )(adj_p, p, dst_p, w_dst_p, b_p)

    # Slice away the zero-padded rows / lanes.
    return out_p[:num_dst, :out_feats]


def _reference(adj, srcfeat, dstfeat, weight, bias):
    a = adj @ srcfeat
    gcn_feat = jnp.concatenate([dstfeat, a], axis=-1)
    return gcn_feat @ weight.T + bias


if __name__ == "__main__":
    key = jax.random.PRNGKey(0)
    k_adj, k_mask, k_src, k_w, k_b = jax.random.split(key, 5)

    num_src, num_dst = 16, 8
    in_feats, out_feats = 32, 32

    # Deterministic synthetic graph: sparse weighted adjacency ("affine" edges)
    aff = jax.random.uniform(k_adj, (num_dst, num_src), dtype=jnp.float32)
    mask = (jax.random.uniform(k_mask, (num_dst, num_src)) < 0.4).astype(
        jnp.float32)
    adj = aff * mask

    # Non-bipartite case of the PyTorch module: dstfeat = srcfeat[:num_dst]
    srcfeat = jax.random.normal(k_src, (num_src, in_feats), dtype=jnp.float32)
    dstfeat = srcfeat[:num_dst]

    # Deterministic Linear(in_feats*2, out_feats) parameters
    weight = 0.05 * jax.random.normal(
        k_w, (out_feats, 2 * in_feats), dtype=jnp.float32)
    bias = 0.01 * jax.random.normal(k_b, (out_feats,), dtype=jnp.float32)

    ref = _reference(adj, srcfeat, dstfeat, weight, bias)

    # Exactness check with f32 compute dtype.
    out_f32 = graph_conv_layer(adj, srcfeat, dstfeat, weight, bias,
                               compute_dtype=jnp.float32)
    out_f32 = jax.block_until_ready(out_f32)
    assert out_f32.shape == (num_dst, out_feats)
    assert jnp.allclose(out_f32, ref, atol=1e-4, rtol=1e-4)

    # Default fast path: bf16 MXU inputs, f32 accumulation.
    out = graph_conv_layer(adj, srcfeat, dstfeat, weight, bias)
    out = jax.block_until_ready(out)
    assert out.shape == (num_dst, out_feats)
    assert jnp.allclose(out, ref, atol=2e-2, rtol=2e-2)

    print("KERNEL_OK")
</pallas_src>

<mosaic_0001>
module attributes {stable_mosaic.version = 11 : i64} {
  func.func @_matmul_kernel(%arg0: i32, %arg1: i32, %arg2: memref<128x128xf32, #tpu.memory_space<vmem>>, %arg3: memref<128x128xf32, #tpu.memory_space<vmem>>, %arg4: memref<128x128xf32, #tpu.memory_space<vmem>>) attributes {dimension_semantics = [#tpu.dimension_semantics<parallel>, #tpu.dimension_semantics<parallel>], iteration_bounds = array<i64: 1, 1>, scalar_prefetch = 0 : i64, scratch_operands = 0 : i64, tpu.core_type = #tpu.core_type<tc>, window_params = [{transform_indices = @transform_0, window_bounds = array<i64: 128, 128>}, {transform_indices = @transform_1, window_bounds = array<i64: 128, 128>}, {transform_indices = @transform_2, window_bounds = array<i64: 128, 128>}]} {
    %c0 = arith.constant 0 : index
    %c0_0 = arith.constant 0 : index
    %0 = vector.load %arg2[%c0, %c0_0] : memref<128x128xf32, #tpu.memory_space<vmem>>, vector<128x128xf32>
    %c0_1 = arith.constant 0 : index
    %c0_2 = arith.constant 0 : index
    %1 = vector.load %arg3[%c0_1, %c0_2] : memref<128x128xf32, #tpu.memory_space<vmem>>, vector<128x128xf32>
    %cst = arith.constant dense<0.000000e+00> : vector<128x128xf32>
    %2 = tpu.matmul %0, %1, %cst {dimension_numbers = #tpu.dot_dimension_numbers<[1], [0], [0], [1], [0, 0, 1, 1], [], []>} : vector<128x128xf32>, vector<128x128xf32>, vector<128x128xf32> -> vector<128x128xf32>
    %c0_3 = arith.constant 0 : index
    %c0_4 = arith.constant 0 : index
    %3 = vector.load %arg4[%c0_3, %c0_4] : memref<128x128xf32, #tpu.memory_space<vmem>>, vector<128x128xf32>
    tpu.vector_store %arg4[%c0_3, %c0_4], %2 {strides = array<i32>} : memref<128x128xf32, #tpu.memory_space<vmem>>, vector<128x128xf32>,
    return
  }
  func.func @transform_0(%arg0: i32, %arg1: i32) -> (i32, i32) {
    %c0_i32 = arith.constant 0 : i32
    %c0_i32_0 = arith.constant 0 : i32
    return %arg0, %c0_i32 : i32, i32
  }
  func.func @transform_1(%arg0: i32, %arg1: i32) -> (i32, i32) {
    %c0_i32 = arith.constant 0 : i32
    %c0_i32_0 = arith.constant 0 : i32
    return %c0_i32, %arg1 : i32, i32
  }
  func.func @transform_2(%arg0: i32, %arg1: i32) -> (i32, i32) {
    %c0_i32 = arith.constant 0 : i32
    return %arg0, %arg1 : i32, i32
  }
}

</mosaic_0001>

<llo_original>
// kernel: tpu_custom_call.1
$region0: #{tpu_custom_call.1}
  #allocation0 [shape = 'u32[]', space=smem, size = 0x4, offset = 0x4, fixed_abs, tag = 'smem constant byte address 0x4 - core index']
  #allocation1 [shape = 'u32[72,128]{1,0:T(1,128)}', space=vmem, size = 0x9000, scoped, tag = 'internal scratch']
  %s0 = inlined_call_operand.hbm [shape: f32[128,128], index: 0, kind: input, shape index: {}]
  %s1 = inlined_call_operand.hbm [shape: f32[128,128], index: 1, kind: input, shape index: {}]
  %s2 = inlined_call_operand.hbm [shape: f32[128,128], index: 2, kind: output, shape index: {}]
  %s3 = sld [smem:[#allocation0]]
  $region26: #{tpu_custom_call.1} parent=0
    _
  %s5 = ssub.s32 1, %s3
  %s6 = scalar_select 0, %s5, %s3
  $region1: #{tpu_custom_call.1} parent=0
    #allocation2 [shape = 'u8[65536]{0}', space=vmem, size = 0x10000, scoped, tag = 'input window, operand 0, single buffered']
    #allocation3 [shape = 's32[1]{0}', space=sflag, size = 0x4, scoped, tag = 'scoped memory for tpu_custom_call.1']
    #allocation4 [shape = 's32[1]{0}', space=sflag, size = 0x4, scoped, tag = 'scoped memory for tpu_custom_call.1']
    #allocation5 [shape = 'u8[65536]{0}', space=vmem, size = 0x10000, scoped, tag = 'input window, operand 1, single buffered']
    #allocation6 [shape = 's32[1]{0}', space=sflag, size = 0x4, scoped, tag = 'scoped memory for tpu_custom_call.1']
    #allocation7 [shape = 'u8[65536]{0}', space=vmem, size = 0x10000, scoped, tag = 'output window, operand 0, single buffered']
    %7 = vsyncpa [#allocation3], 0
    %8 = vsyncpa [#allocation6], 0
    %9 = vsyncpa [#allocation4], 0
    // Predicated region
    $region2: #{tpu_custom_call.1} parent=1 // pred_check
      _
    $region3: #{tpu_custom_call.1} parent=1 // pred_check_branch
      %11 = sbr.rel (0) target = $region5
    $region4: #{tpu_custom_call.1} parent=1 // pred_region
      %13 = vsyncadd [#allocation3], 0
      %s14 = sshll.u32 %s0, 4
      %s15 = int_to_ptr.hbm [resolvable:$true] %s14
      %s16 = sshll.u32 [#allocation2], 4
      %s17 = int_to_ptr.vmem [resolvable:$true] %s16
      %22 = dma.hbm_to_vmem [thread:$0]  %s15, 2048, %s17, [#allocation3], 128, 128, 8
    $region5: #{tpu_custom_call.1} parent=1 // pred_fallthru
      _
    // Predicated region
    $region6: #{tpu_custom_call.1} parent=1 // pred_check
      _
    $region7: #{tpu_custom_call.1} parent=1 // pred_check_branch
      %24 = sbr.rel (0) target = $region9
    $region8: #{tpu_custom_call.1} parent=1 // pred_region
      %26 = vsyncadd [#allocation6], 0
      %s27 = sshll.u32 %s1, 4
      %s28 = int_to_ptr.hbm [resolvable:$true] %s27
      %s29 = sshll.u32 [#allocation5], 4
      %s30 = int_to_ptr.vmem [resolvable:$true] %s29
      %35 = dma.hbm_to_vmem [thread:$0]  %s28, 2048, %s30, [#allocation6], 128, 128, 8
    $region9: #{tpu_custom_call.1} parent=1 // pred_fallthru
      _
    // Predicated region
    $region10: #{tpu_custom_call.1} parent=1 // pred_check
      _
    $region11: #{tpu_custom_call.1} parent=1 // pred_check_branch
      %37 = sbr.rel (0) target = $region13
    $region12: #{tpu_custom_call.1} parent=1 // pred_region
      %39 = dma.done [#allocation3], 2048
    $region13: #{tpu_custom_call.1} parent=1 // pred_fallthru
      _
    // Predicated region
    $region14: #{tpu_custom_call.1} parent=1 // pred_check
      _
    $region15: #{tpu_custom_call.1} parent=1 // pred_check_branch
      %41 = sbr.rel (0) target = $region17
    $region16: #{tpu_custom_call.1} parent=1 // pred_region
      %43 = dma.done [#allocation6], 2048
    $region17: #{tpu_custom_call.1} parent=1 // pred_fallthru
      _
    %v44 = vld [vmem:[#allocation2] sm:$0xff]
    %v45 = vld [vmem:[#allocation2 + $0x8] sm:$0xff]
    %v46 = vld [vmem:[#allocation2 + $0x10] sm:$0xff]
    %v47 = vld [vmem:[#allocation2 + $0x18] sm:$0xff]
    %v48 = vld [vmem:[#allocation2 + $0x20] sm:$0xff]
    %v49 = vld [vmem:[#allocation2 + $0x28] sm:$0xff]
    %v50 = vld [vmem:[#allocation2 + $0x30] sm:$0xff]
    %v51 = vld [vmem:[#allocation2 + $0x38] sm:$0xff]
    %v52 = vld [vmem:[#allocation2 + $0x40] sm:$0xff]
    %v53 = vld [vmem:[#allocation2 + $0x48] sm:$0xff]
    %v54 = vld [vmem:[#allocation2 + $0x50] sm:$0xff]
    %v55 = vld [vmem:[#allocation2 + $0x58] sm:$0xff]
    %v56 = vld [vmem:[#allocation2 + $0x60] sm:$0xff]
    %v57 = vld [vmem:[#allocation2 + $0x68] sm:$0xff]
    %v58 = vld [vmem:[#allocation2 + $0x70] sm:$0xff]
    %v59 = vld [vmem:[#allocation2 + $0x78] sm:$0xff]
    %v60 = vld [vmem:[#allocation5] sm:$0xff]
    %v61 = vld [vmem:[#allocation5 + $0x8] sm:$0xff]
    %v62 = vld [vmem:[#allocation5 + $0x10] sm:$0xff]
    %v63 = vld [vmem:[#allocation5 + $0x18] sm:$0xff]
    %v64 = vld [vmem:[#allocation5 + $0x20] sm:$0xff]
    %v65 = vld [vmem:[#allocation5 + $0x28] sm:$0xff]
    %v66 = vld [vmem:[#allocation5 + $0x30] sm:$0xff]
    %v67 = vld [vmem:[#allocation5 + $0x38] sm:$0xff]
    %v68 = vld [vmem:[#allocation5 + $0x40] sm:$0xff]
    %v69 = vld [vmem:[#allocation5 + $0x48] sm:$0xff]
    %v70 = vld [vmem:[#allocation5 + $0x50] sm:$0xff]
    %v71 = vld [vmem:[#allocation5 + $0x58] sm:$0xff]
    %v72 = vld [vmem:[#allocation5 + $0x60] sm:$0xff]
    %v73 = vld [vmem:[#allocation5 + $0x68] sm:$0xff]
    %v74 = vld [vmem:[#allocation5 + $0x70] sm:$0xff]
    %v75 = vld [vmem:[#allocation5 + $0x78] sm:$0xff]
    %76 = vmatpush.msra.mxu0 %v75
    %77 = vmatpush.msra.mxu0 %v74
    %78 = vmatpush.msra.mxu0 %v73
    %79 = vmatpush.msra.mxu0 %v72
    %80 = vmatpush.msra.mxu0 %v71
    %81 = vmatpush.msra.mxu0 %v70
    %82 = vmatpush.msra.mxu0 %v69
    %83 = vmatpush.msra.mxu0 %v68
    %84 = vmatpush.msra.mxu0 %v67
    %85 = vmatpush.msra.mxu0 %v66
    %86 = vmatpush.msra.mxu0 %v65
    %87 = vmatpush.msra.mxu0 %v64
    %88 = vmatpush.msra.mxu0 %v63
    %89 = vmatpush.msra.mxu0 %v62
    %90 = vmatpush.msra.mxu0 %v61
    %91 = vmatpush.msra.mxu0 %v60
    %92 = vmatmul.f32.gmra.mxu0 %v44
    %v93 = vpop.f32.mrf.mxu0
    %v94 = vadd.f32 0.0, %v93
    %95 = vmatmul.f32.gmra.mxu0 %v45
    %v96 = vpop.f32.mrf.mxu0
    %v97 = vadd.f32 0.0, %v96
    %98 = vmatmul.f32.gmra.mxu0 %v46
    %v99 = vpop.f32.mrf.mxu0
    %v100 = vadd.f32 0.0, %v99
    %101 = vmatmul.f32.gmra.mxu0 %v47
    %v102 = vpop.f32.mrf.mxu0
    %v103 = vadd.f32 0.0, %v102
    %104 = vmatmul.f32.gmra.mxu0 %v48
    %v105 = vpop.f32.mrf.mxu0
    %v106 = vadd.f32 0.0, %v105
    %107 = vmatmul.f32.gmra.mxu0 %v49
    %v108 = vpop.f32.mrf.mxu0
    %v109 = vadd.f32 0.0, %v108
    %110 = vmatmul.f32.gmra.mxu0 %v50
    %v111 = vpop.f32.mrf.mxu0
    %v112 = vadd.f32 0.0, %v111
    %113 = vmatmul.f32.gmra.mxu0 %v51
    %v114 = vpop.f32.mrf.mxu0
    %v115 = vadd.f32 0.0, %v114
    %116 = vmatmul.f32.gmra.mxu0 %v52
    %v117 = vpop.f32.mrf.mxu0
    %v118 = vadd.f32 0.0, %v117
    %119 = vmatmul.f32.gmra.mxu0 %v53
    %v120 = vpop.f32.mrf.mxu0
    %v121 = vadd.f32 0.0, %v120
    %122 = vmatmul.f32.gmra.mxu0 %v54
    %v123 = vpop.f32.mrf.mxu0
    %v124 = vadd.f32 0.0, %v123
    %125 = vmatmul.f32.gmra.mxu0 %v55
    %v126 = vpop.f32.mrf.mxu0
    %v127 = vadd.f32 0.0, %v126
    %128 = vmatmul.f32.gmra.mxu0 %v56
    %v129 = vpop.f32.mrf.mxu0
    %v130 = vadd.f32 0.0, %v129
    %131 = vmatmul.f32.gmra.mxu0 %v57
    %v132 = vpop.f32.mrf.mxu0
    %v133 = vadd.f32 0.0, %v132
    %134 = vmatmul.f32.gmra.mxu0 %v58
    %v135 = vpop.f32.mrf.mxu0
    %v136 = vadd.f32 0.0, %v135
    %137 = vmatmul.f32.gmra.mxu0 %v59
    %v138 = vpop.f32.mrf.mxu0
    %v139 = vadd.f32 0.0, %v138
    %140 = vdwg.mxu0
    %141 = vst [vmem:[#allocation7] sm:$0xff] %v94
    %142 = vst [vmem:[#allocation7 + $0x8] sm:$0xff] %v97
    %143 = vst [vmem:[#allocation7 + $0x10] sm:$0xff] %v100
    %144 = vst [vmem:[#allocation7 + $0x18] sm:$0xff] %v103
    %145 = vst [vmem:[#allocation7 + $0x20] sm:$0xff] %v106
    %146 = vst [vmem:[#allocation7 + $0x28] sm:$0xff] %v109
    %147 = vst [vmem:[#allocation7 + $0x30] sm:$0xff] %v112
    %148 = vst [vmem:[#allocation7 + $0x38] sm:$0xff] %v115
    %149 = vst [vmem:[#allocation7 + $0x40] sm:$0xff] %v118
    %150 = vst [vmem:[#allocation7 + $0x48] sm:$0xff] %v121
    %151 = vst [vmem:[#allocation7 + $0x50] sm:$0xff] %v124
    %152 = vst [vmem:[#allocation7 + $0x58] sm:$0xff] %v127
    %153 = vst [vmem:[#allocation7 + $0x60] sm:$0xff] %v130
    %154 = vst [vmem:[#allocation7 + $0x68] sm:$0xff] %v133
    %155 = vst [vmem:[#allocation7 + $0x70] sm:$0xff] %v136
    %156 = vst [vmem:[#allocation7 + $0x78] sm:$0xff] %v139
    // Predicated region
    $region18: #{tpu_custom_call.1} parent=1 // pred_check
      _
    $region19: #{tpu_custom_call.1} parent=1 // pred_check_branch
      %158 = sbr.rel (0) target = $region21
    $region20: #{tpu_custom_call.1} parent=1 // pred_region
      %160 = vsyncadd [#allocation4], 0
      %s161 = sshll.u32 [#allocation7], 4
      %s162 = int_to_ptr.vmem [resolvable:$true] %s161
      %s163 = sshll.u32 %s2, 4
      %s164 = int_to_ptr.hbm [resolvable:$true] %s163
      %169 = dma.vmem_to_hbm [thread:$0]  %s162, 2048, %s164, [#allocation4], 128, 128, 8
    $region21: #{tpu_custom_call.1} parent=1 // pred_fallthru
      _
    // Predicated region
    $region22: #{tpu_custom_call.1} parent=1 // pred_check
      _
    $region23: #{tpu_custom_call.1} parent=1 // pred_check_branch
      %171 = sbr.rel (0) target = $region25
    $region24: #{tpu_custom_call.1} parent=1 // pred_region
      %173 = dma.done [#allocation4], 2048
    $region25: #{tpu_custom_call.1} parent=1 // pred_fallthru
      _
    %174 = vsyncpa [#allocation3], 1
    %175 = vsyncpa [#allocation6], 1
    %176 = vsyncpa [#allocation4], 1

</llo_original>
